<compile_context>
chip_gen: v5e
topology: v5e:2x2
jax: 0.10.0
libtpu: 0.0.40
codegen_flags: <defaults>
</compile_context>

<pallas_src>
import functools

import jax
import jax.numpy as jnp
from jax import lax
from jax.experimental import pallas as pl
from jax.experimental.pallas import tpu as pltpu


def _pv2bev_kernel(flat_ref, feat_ref, o_ref, *, m_tile, tn):
    """Accumulate one (b, z, hw-tile) point tile into the resident (ch, M_tile) block."""
    t = pl.program_id(2)   # hw-tile axis (reduction)
    z = pl.program_id(3)   # depth-bin axis (reduction)

    @pl.when((t == 0) & (z == 0))
    def _():
        o_ref[...] = jnp.zeros_like(o_ref)

    # Local bucket id inside this output tile; invalid points carry -1 and points
    # belonging to other output tiles fall outside [0, m_tile) -> never match.
    m_base = pl.program_id(1) * m_tile
    local = flat_ref[...] - m_base                               # (1, TN) int32

    # Transposed one-hot (M_tile, TN): bucket id on sublanes, point id on lanes.
    # flat stays on the lane axis (free sublane broadcast, no relayout needed).
    row_iota = lax.broadcasted_iota(jnp.int32, (m_tile, tn), 0)
    onehot_t = jnp.where(row_iota == local, 1.0, 0.0).astype(feat_ref.dtype)

    feats = feat_ref[0]                                          # (ch, TN) bf16
    # NT matmul on the MXU (same pattern as attention q @ k.T):
    #   (ch, TN) . (M_tile, TN)^T -> (ch, M_tile), f32 accumulate.
    acc = lax.dot_general(feats, onehot_t,
                          dimension_numbers=(((1,), (1,)), ((), ())),
                          preferred_element_type=jnp.float32)
    o_ref[0] += acc


def _grid_dims(voxel_size, ranges):
    zs = int(round((ranges[3] - ranges[0]) / voxel_size[0]))
    xs = int(round((ranges[4] - ranges[1]) / voxel_size[1]))
    ys = int(round((ranges[5] - ranges[2]) / voxel_size[2]))
    return zs, xs, ys


def _round_up(a, b):
    return (a + b - 1) // b * b


def pv2bev_forward(x, frustum_xyz, *, voxel_size, ranges, n_z,
                   tn_cap=512, m_tile_cap=512, feat_dtype=jnp.bfloat16):
    """Pallas PV2BEV forward.  x: (bs, ch, h, w) f32; frustum_xyz: (bs, n_z, h, w, 3) int."""
    bs, ch, h, w = x.shape
    zs, xs, ys = _grid_dims(voxel_size, ranges)
    hw = h * w

    # ---- features: (bs, ch, h, w) -> (bs, ch, HW_pad); NO n_z replication in HBM ----
    feats = x.reshape(bs, ch, hw).astype(feat_dtype)
    tn = min(_round_up(tn_cap, 128), _round_up(hw, 128))   # point tile (matmul K dim)
    hw_pad = _round_up(hw, tn)
    if hw_pad != hw:
        feats = jnp.pad(feats, ((0, 0), (0, 0), (0, hw_pad - hw)))
    n_hw = hw_pad // tn

    # ---- per-point flat BEV bucket (z*XS + x), -1 sentinel for invalid / padding ----
    xi = frustum_xyz[..., 0].astype(jnp.int32)
    yi = frustum_xyz[..., 1].astype(jnp.int32)
    zi = frustum_xyz[..., 2].astype(jnp.int32)
    valid = ((xi >= 0) & (xi < xs) & (yi >= 0) & (yi < ys) &
             (zi >= 0) & (zi < zs))
    flat = jnp.where(valid, zi * xs + xi, -1).reshape(bs, n_z, hw)
    if hw_pad != hw:
        flat = jnp.pad(flat, ((0, 0), (0, 0), (0, hw_pad - hw)), constant_values=-1)
    flat = flat.reshape(1, bs * n_z * hw_pad)               # (1, Nprime_pad), point order (b, z, hw)

    # ---- output tiling over the BEV grid (lane axis) ----
    m = zs * xs
    m_tile = min(_round_up(m_tile_cap, 128), _round_up(m, 128))
    m_pad = _round_up(m, m_tile)
    n_m = m_pad // m_tile

    kernel = functools.partial(_pv2bev_kernel, m_tile=m_tile, tn=tn)

    out = pl.pallas_call(
        kernel,
        out_shape=jax.ShapeDtypeStruct((bs, ch, m_pad), jnp.float32),
        grid_spec=pltpu.PrefetchScalarGridSpec(
            num_scalar_prefetch=0,
            # (batch, BEV tile, hw tile, depth bin); z innermost so the pixel
            # feature tile (index_map ignores z) stays resident across depth bins.
            grid=(bs, n_m, n_hw, n_z),
            in_specs=[
                # flat bucket ids: (1, TN) column tile of the (1, Nprime_pad) row.
                pl.BlockSpec((1, tn),
                             lambda b, mt, t, z: (0, (b * n_z + z) * n_hw + t)),
                # pixel features: (1, ch, TN); reused across z and across BEV tiles.
                pl.BlockSpec((1, ch, tn),
                             lambda b, mt, t, z: (b, 0, t)),
            ],
            # resident accumulator, lane-dense (ch on sublanes, BEV buckets on lanes).
            out_specs=pl.BlockSpec((1, ch, m_tile),
                                   lambda b, mt, t, z: (b, 0, mt)),
        ),
        compiler_params=pltpu.CompilerParams(
            dimension_semantics=("parallel", "parallel", "arbitrary", "arbitrary")),
    )(flat, feats)

    # (bs, ch, M_pad) -> (bs, ch, ZS, XS), matching the PyTorch NCHW output.
    return out[:, :, :m].reshape(bs, ch, zs, xs)


def pv2bev_reference(x, frustum_xyz, *, voxel_size, ranges, n_z):
    """Pure-JAX reference with identical semantics (masked scatter-add over (b,z,x))."""
    bs, ch, h, w = x.shape
    zs, xs, ys = _grid_dims(voxel_size, ranges)
    nprime = bs * n_z * h * w
    feats = jnp.transpose(x, (0, 2, 3, 1))
    feats = jnp.broadcast_to(feats[:, None], (bs, n_z, h, w, ch)).reshape(nprime, ch)
    feats = feats.astype(jnp.float32)
    coords = frustum_xyz.reshape(nprime, 3).astype(jnp.int32)
    batch_idx = jnp.repeat(jnp.arange(bs, dtype=jnp.int32), nprime // bs)
    xi, yi, zi = coords[:, 0], coords[:, 1], coords[:, 2]
    valid = ((xi >= 0) & (xi < xs) & (yi >= 0) & (yi < ys) &
             (zi >= 0) & (zi < zs))
    flat = jnp.where(valid, batch_idx * (zs * xs) + zi * xs + xi, 0)
    contrib = jnp.where(valid[:, None], feats, 0.0)
    out = jnp.zeros((bs * zs * xs, ch), jnp.float32).at[flat].add(contrib)
    return out.reshape(bs, zs, xs, ch).transpose(0, 3, 1, 2)


def init_implicit_depth_conv_params(key, in_channels, n_z):
    # NOTE: implicit_depth_conv is declared in PV2BEV.__init__ but never used in
    # forward(); parameters are initialized deterministically for completeness only.
    k1, k2 = jax.random.split(key)
    return {
        "conv1_w": jax.random.normal(k1, (128, in_channels, 1, 1), jnp.float32) * 0.02,
        "conv1_b": jnp.zeros((128,), jnp.float32),
        "conv2_w": jax.random.normal(k2, (n_z, 128, 1, 1), jnp.float32) * 0.02,
        "conv2_b": jnp.zeros((n_z,), jnp.float32),
    }


if __name__ == "__main__":
    key = jax.random.PRNGKey(0)
    k_x, k_f, k_p = jax.random.split(key, 3)

    # Small but representative shapes.
    bs, ch, h, w, n_z = 2, 16, 8, 16, 4
    voxel_size = (1.0, 1.0, 1.0)
    ranges = (0.0, 0.0, 0.0, 8.0, 8.0, 8.0)        # -> ZS = XS = YS = 8

    x = jax.random.normal(k_x, (bs, ch, h, w), dtype=jnp.float32)
    # Integer voxel indices; deliberately includes out-of-range values so the
    # bounds-masking path is exercised.
    frustum_xyz = jax.random.randint(k_f, (bs, n_z, h, w, 3), -2, 10, dtype=jnp.int32)

    _params = init_implicit_depth_conv_params(k_p, ch, n_z)  # unused by forward

    out = pv2bev_forward(x, frustum_xyz, voxel_size=voxel_size,
                         ranges=ranges, n_z=n_z)
    out = jax.block_until_ready(out)

    # Tight check: same bf16 feature quantization as the kernel (f32 accumulation).
    ref_bf16 = pv2bev_reference(x.astype(jnp.bfloat16).astype(jnp.float32),
                                frustum_xyz, voxel_size=voxel_size,
                                ranges=ranges, n_z=n_z)
    # Loose check: full-precision reference, tolerance covers bf16 feature rounding.
    ref_f32 = pv2bev_reference(x, frustum_xyz, voxel_size=voxel_size,
                               ranges=ranges, n_z=n_z)

    assert out.shape == (bs, ch, 8, 8), out.shape
    assert jnp.allclose(out, ref_bf16, atol=1e-4, rtol=1e-4), "mismatch vs bf16 reference"
    assert jnp.allclose(out, ref_f32, atol=5e-2, rtol=5e-2), "mismatch vs f32 reference"
    print("KERNEL_OK")
</pallas_src>

<mosaic_0001>
module attributes {stable_mosaic.version = 11 : i64} {
  func.func @_pv2bev_kernel(%arg0: i32, %arg1: i32, %arg2: i32, %arg3: i32, %arg4: memref<1x128xi32, #tpu.memory_space<vmem>>, %arg5: memref<1x16x128xbf16, #tpu.memory_space<vmem>>, %arg6: memref<1x16x128xf32, #tpu.memory_space<vmem>>) attributes {dimension_semantics = [#tpu.dimension_semantics<parallel>, #tpu.dimension_semantics<parallel>, #tpu.dimension_semantics<arbitrary>, #tpu.dimension_semantics<arbitrary>], iteration_bounds = array<i64: 2, 1, 1, 4>, scalar_prefetch = 0 : i64, scratch_operands = 0 : i64, tpu.core_type = #tpu.core_type<tc>, window_params = [{transform_indices = @transform_0, window_bounds = array<i64: 1, 128>}, {transform_indices = @transform_1, window_bounds = array<i64: 1, 16, 128>}, {transform_indices = @transform_2, window_bounds = array<i64: 1, 16, 128>}]} {
    %c0_i32 = arith.constant 0 : i32
    %0 = arith.cmpi eq, %arg2, %c0_i32 : i32
    %c0_i32_0 = arith.constant 0 : i32
    %1 = arith.cmpi eq, %arg3, %c0_i32_0 : i32
    %2 = arith.andi %0, %1 : i1
    %3 = arith.extui %2 : i1 to i32
    %c0_i32_1 = arith.constant 0 : i32
    %4 = arith.cmpi ne, %3, %c0_i32_1 : i32
    scf.if %4 {
      %cst_14 = arith.constant 0.000000e+00 : f32
      %25 = vector.broadcast %cst_14 : f32 to vector<1x16x128xf32>
      %c0_15 = arith.constant 0 : index
      %c0_16 = arith.constant 0 : index
      %c0_17 = arith.constant 0 : index
      %26 = vector.load %arg6[%c0_15, %c0_16, %c0_17] : memref<1x16x128xf32, #tpu.memory_space<vmem>>, vector<1x16x128xf32>
      tpu.vector_store %arg6[%c0_15, %c0_16, %c0_17], %25 {strides = array<i32>} : memref<1x16x128xf32, #tpu.memory_space<vmem>>, vector<1x16x128xf32>,
    } else {
    }
    %c128_i32 = arith.constant 128 : i32
    %5 = arith.muli %arg1, %c128_i32 : i32
    %c0 = arith.constant 0 : index
    %c0_2 = arith.constant 0 : index
    %6 = vector.load %arg4[%c0, %c0_2] : memref<1x128xi32, #tpu.memory_space<vmem>>, vector<1x128xi32>
    %7 = vector.broadcast %5 : i32 to vector<1x128xi32>
    %8 = arith.subi %6, %7 : vector<1x128xi32>
    %9 = tpu.iota {dimensions = array<i32: 0>} : vector<128x128xi32>
    %10 = vector.broadcast %8 : vector<1x128xi32> to vector<128x128xi32>
    %11 = arith.cmpi eq, %9, %10 : vector<128x128xi32>
    %cst = arith.constant 1.000000e+00 : f32
    %cst_3 = arith.constant 0.000000e+00 : f32
    %12 = vector.broadcast %cst : f32 to vector<128x128xf32>
    %13 = vector.broadcast %cst_3 : f32 to vector<128x128xf32>
    %14 = arith.select %11, %12, %13 : vector<128x128xi1>, vector<128x128xf32>
    %15 = arith.truncf %14 : vector<128x128xf32> to vector<128x128xbf16>
    %c0_4 = arith.constant 0 : index
    %c0_5 = arith.constant 0 : index
    %c0_6 = arith.constant 0 : index
    %16 = vector.load %arg5[%c0_4, %c0_5, %c0_6] : memref<1x16x128xbf16, #tpu.memory_space<vmem>>, vector<1x16x128xbf16>
    %17 = vector.shape_cast %16 : vector<1x16x128xbf16> to vector<16x128xbf16>
    %cst_7 = arith.constant dense<0.000000e+00> : vector<16x128xf32>
    %18 = tpu.matmul %17, %15, %cst_7 {dimension_numbers = #tpu.dot_dimension_numbers<[1], [1], [0], [0], [0, 0, 1, 0], [], []>} : vector<16x128xbf16>, vector<128x128xbf16>, vector<16x128xf32> -> vector<16x128xf32>
    %c0_8 = arith.constant 0 : index
    %c0_9 = arith.constant 0 : index
    %c0_10 = arith.constant 0 : index
    %19 = vector.load %arg6[%c0_8, %c0_9, %c0_10] : memref<1x16x128xf32, #tpu.memory_space<vmem>>, vector<1x16x128xf32>
    %20 = vector.shape_cast %19 : vector<1x16x128xf32> to vector<16x128xf32>
    %21 = arith.addf %20, %18 : vector<16x128xf32>
    %c0_11 = arith.constant 0 : index
    %c0_12 = arith.constant 0 : index
    %c0_13 = arith.constant 0 : index
    %22 = vector.load %arg6[%c0_11, %c0_12, %c0_13] : memref<1x16x128xf32, #tpu.memory_space<vmem>>, vector<1x16x128xf32>
    %23 = vector.shape_cast %22 : vector<1x16x128xf32> to vector<16x128xf32>
    %24 = vector.shape_cast %21 : vector<16x128xf32> to vector<1x16x128xf32>
    tpu.vector_store %arg6[%c0_11, %c0_12, %c0_13], %24 {strides = array<i32>} : memref<1x16x128xf32, #tpu.memory_space<vmem>>, vector<1x16x128xf32>,
    return
  }
  func.func @transform_0(%arg0: i32, %arg1: i32, %arg2: i32, %arg3: i32) -> (i32, i32) {
    %c4_i32 = arith.constant 4 : i32
    %0 = arith.muli %arg0, %c4_i32 : i32
    %1 = arith.addi %0, %arg3 : i32
    %c1_i32 = arith.constant 1 : i32
    %2 = arith.muli %1, %c1_i32 : i32
    %3 = arith.addi %2, %arg2 : i32
    %c0_i32 = arith.constant 0 : i32
    %c0_i32_0 = arith.constant 0 : i32
    return %c0_i32, %3 : i32, i32
  }
  func.func @transform_1(%arg0: i32, %arg1: i32, %arg2: i32, %arg3: i32) -> (i32, i32, i32) {
    %c0_i32 = arith.constant 0 : i32
    %c0_i32_0 = arith.constant 0 : i32
    return %arg0, %c0_i32, %arg2 : i32, i32, i32
  }
  func.func @transform_2(%arg0: i32, %arg1: i32, %arg2: i32, %arg3: i32) -> (i32, i32, i32) {
    %c0_i32 = arith.constant 0 : i32
    %c0_i32_0 = arith.constant 0 : i32
    return %arg0, %c0_i32, %arg1 : i32, i32, i32
  }
}

</mosaic_0001>

<llo_original>
// kernel: tpu_custom_call.1
$region0: #{tpu_custom_call.1}
  #allocation0 [shape = 'u32[]', space=smem, size = 0x4, offset = 0x4, fixed_abs, tag = 'smem constant byte address 0x4 - core index']
  #allocation1 [shape = 'u32[72,128]{1,0:T(1,128)}', space=vmem, size = 0x9000, scoped, tag = 'internal scratch']
  %s0 = inlined_call_operand.hbm [shape: s32[1,1024], index: 0, kind: input, shape index: {}]
  %s1 = inlined_call_operand.hbm [shape: bf16[2,16,128], index: 1, kind: input, shape index: {}]
  %s2 = inlined_call_operand.hbm [shape: f32[2,16,128], index: 2, kind: output, shape index: {}]
  %s3 = sld [smem:[#allocation0]]
  $region53: #{tpu_custom_call.1} parent=0
    _
  %s5 = ssub.s32 1, %s3
  %s6 = scalar_select 0, %s5, %s3
  $region1: #{tpu_custom_call.1} parent=0
    #allocation2 [shape = 'u8[1024]{0}', space=vmem, size = 0x400, scoped, tag = 'input window, operand 0']
    #allocation3 [shape = 's32[2]{0}', space=sflag, size = 0x8, scoped, tag = 'scoped memory for tpu_custom_call.1']
    #allocation4 [shape = 's32[2]{0}', space=sflag, size = 0x8, scoped, tag = 'scoped memory for tpu_custom_call.1']
    #allocation5 [shape = 'u8[8192]{0}', space=vmem, size = 0x2000, scoped, tag = 'input window, operand 1']
    #allocation6 [shape = 's32[2]{0}', space=sflag, size = 0x8, scoped, tag = 'scoped memory for tpu_custom_call.1']
    #allocation7 [shape = 'u8[16384]{0}', space=vmem, size = 0x4000, scoped, tag = 'output window, operand 0']
    %7 = vsyncpa [#allocation3], 0
    %s8 = scalar_lea.sflag [#allocation3], 1
    %9 = vsyncpa %s8, 0
    %10 = vsyncpa [#allocation6], 0
    %s11 = scalar_lea.sflag [#allocation6], 1
    %12 = vsyncpa %s11, 0
    %13 = vsyncpa [#allocation4], 0
    %s14 = scalar_lea.sflag [#allocation4], 1
    %15 = vsyncpa %s14, 0
    loop: start=0, step=1, limit=10
    $region2: #{tpu_custom_call.1} parent=1 // loop_pre_header
      _
    $region3: #{tpu_custom_call.1} parent=1 // loop_header
      %s17 = sphi 0, %s21
      %p18 = scmp.ge.s32.totalorder %s17, 10
      %s24 = sphi 0, %s50
      %s25 = sphi 0, %s46
      %s26 = sphi 0, %s42
      %s27 = sphi 0, %s38
      %s28 = sphi 0, %s24
      %s29 = sphi 0, %s25
      %s30 = sphi 0, %s26
      %s31 = sphi 0, %s27
      %s32 = sphi 0, %s28
      %s33 = sphi 0, %s29
      %s34 = sphi 0, %s30
      %s35 = sphi 0, %s31
      %s59 = sphi 0, %s61
      %s62 = sphi 0, %s59
      %s63 = sphi 0, %s62
      %s79 = sphi 0, %s63
      %s87 = sphi 0, %s89
      %s90 = sphi 0, %s87
      %s91 = sphi 0, %s90
      %s107 = sphi 0, %s91
      %s115 = sphi 0, %s117
      %s118 = sphi 0, %s115
      %s119 = sphi 0, %s118
      %s135 = sphi 0, %s119
    $region4: #{tpu_custom_call.1} parent=1 // loop_header_branch
      %20 = sbr.rel (%p18) target = $region8
    $region5: #{tpu_custom_call.1} parent=1 // loop_body
      %s22 = ssub.s32 %s17, 1
      %s23 = ssub.s32 %s17, 2
      %s36 = sadd.s32 1, %s27
      %p37 = scmp.ge.s32.totalorder %s36, 4
      %s38 = scalar_select %p37, 0, %s36
      %s39 = sadd.s32 1, %s26
      %s40 = scalar_select %p37, %s39, %s26
      %p41 = scmp.ge.s32.totalorder %s40, 1
      %s42 = scalar_select %p41, 0, %s40
      %s43 = sadd.s32 1, %s25
      %s44 = scalar_select %p41, %s43, %s25
      %p45 = scmp.ge.s32.totalorder %s44, 1
      %s46 = scalar_select %p45, 0, %s44
      %s47 = sadd.s32 1, %s24
      %s48 = scalar_select %p45, %s47, %s24
      %p49 = scmp.ge.s32.totalorder %s48, 2
      %s50 = scalar_select %p49, 0, %s48
      %s51 = smul.u32 %s24, 4
      %s52 = sadd.s32 %s51, %s27
      %s53 = sadd.s32 %s52, %s26
      %s54 = smul.u32 %s50, 4
      %s55 = sadd.s32 %s54, %s38
      %s56 = sadd.s32 %s55, %s42
      %s57 = ssub.s32 %s53, %s56
      %p58 = scmp.eq.s32.totalorder %s57, 0
      %s60 = sadd.s32 %s59, 1
      %s61 = scalar_select %p58, %s59, %s60
      %p64 = pneg %p58
      %p65 = scmp.eq.s32.totalorder %s17, 7
      %p66 = por %p64, %p65
      %p67 = scmp.ne.s32.totalorder %s59, %s62
      %p68 = scmp.eq.s32.totalorder %s17, 0
      %p69 = por %p67, %p68
      %p70 = scmp.ne.s32.totalorder %s59, %s62
      %p71 = scmp.eq.s32.totalorder %s22, 7
      %p72 = por %p70, %p71
      %p73 = scmp.ne.s32.totalorder %s62, %s63
      %p74 = scmp.eq.s32.totalorder %s22, 0
      %p75 = por %p73, %p74
      %p76 = scmp.ne.s32.totalorder %s62, %s63
      %p77 = scmp.eq.s32.totalorder %s23, 7
      %p78 = por %p76, %p77
      %p80 = scmp.ne.s32.totalorder %s63, %s79
      %p81 = scmp.eq.s32.totalorder %s23, 0
      %p82 = por %p80, %p81
      %s83 = ssub.s32 %s24, %s50
      %s84 = ssub.s32 %s26, %s42
      %s85 = sor.u32 %s83, %s84
      %p86 = scmp.eq.s32.totalorder %s85, 0
      %s88 = sadd.s32 %s87, 1
      %s89 = scalar_select %p86, %s87, %s88
      %p92 = pneg %p86
      %p93 = scmp.eq.s32.totalorder %s17, 7
      %p94 = por %p92, %p93
      %p95 = scmp.ne.s32.totalorder %s87, %s90
      %p96 = scmp.eq.s32.totalorder %s17, 0
      %p97 = por %p95, %p96
      %p98 = scmp.ne.s32.totalorder %s87, %s90
      %p99 = scmp.eq.s32.totalorder %s22, 7
      %p100 = por %p98, %p99
      %p101 = scmp.ne.s32.totalorder %s90, %s91
      %p102 = scmp.eq.s32.totalorder %s22, 0
      %p103 = por %p101, %p102
      %p104 = scmp.ne.s32.totalorder %s90, %s91
      %p105 = scmp.eq.s32.totalorder %s23, 7
      %p106 = por %p104, %p105
      %p108 = scmp.ne.s32.totalorder %s91, %s107
      %p109 = scmp.eq.s32.totalorder %s23, 0
      %p110 = por %p108, %p109
      %s111 = ssub.s32 %s24, %s50
      %s112 = ssub.s32 %s25, %s46
      %s113 = sor.u32 %s111, %s112
      %p114 = scmp.eq.s32.totalorder %s113, 0
      %s116 = sadd.s32 %s115, 1
      %s117 = scalar_select %p114, %s115, %s116
      %p120 = pneg %p114
      %p121 = scmp.eq.s32.totalorder %s17, 7
      %p122 = por %p120, %p121
      %p123 = scmp.ne.s32.totalorder %s115, %s118
      %p124 = scmp.eq.s32.totalorder %s17, 0
      %p125 = por %p123, %p124
      %p126 = scmp.ne.s32.totalorder %s115, %s118
      %p127 = scmp.eq.s32.totalorder %s22, 7
      %p128 = por %p126, %p127
      %p129 = scmp.ne.s32.totalorder %s118, %s119
      %p130 = scmp.eq.s32.totalorder %s22, 0
      %p131 = por %p129, %p130
      %p132 = scmp.ne.s32.totalorder %s118, %s119
      %p133 = scmp.eq.s32.totalorder %s23, 7
      %p134 = por %p132, %p133
      %p136 = scmp.ne.s32.totalorder %s119, %s135
      %p137 = scmp.eq.s32.totalorder %s23, 0
      %p138 = por %p136, %p137
      %p139 = scmp.le.s32.totalorder 1, %s17
      %p140 = scmp.lt.s32.totalorder %s17, 9
      %p141 = pnand %p139, %p140
      %p142 = pneg %p141
      // Predicated region
      $region9: #{tpu_custom_call.1} parent=5 // pred_check
        _
      $region10: #{tpu_custom_call.1} parent=5 // pred_check_branch
        %144 = sbr.rel (%p141) target = $region12
      $region11: #{tpu_custom_call.1} parent=5 // pred_region
        %s145 = ssub.s32 %s17, 1
      $region12: #{tpu_custom_call.1} parent=5 // pred_fallthru
        _
      %p146 = scmp.lt.s32.totalorder %s17, 8
      // Predicated region
      $region13: #{tpu_custom_call.1} parent=5 // pred_check
        %p147 = pneg %p146
      $region14: #{tpu_custom_call.1} parent=5 // pred_check_branch
        %149 = sbr.rel (%p147) target = $region16
      $region15: #{tpu_custom_call.1} parent=5 // pred_region
        // Predicated region
        $region17: #{tpu_custom_call.1} parent=15 // pred_check
          %p150 = pneg %p69
        $region18: #{tpu_custom_call.1} parent=15 // pred_check_branch
          %152 = sbr.rel (%p150) target = $region20
        $region19: #{tpu_custom_call.1} parent=15 // pred_region
          %s153 = sand.u32 %s59, 1
          %s154 = scalar_lea.sflag [#allocation3], %s153
          %s155 = sand.u32 %s59, 1
          %s156 = scalar_lea.vmem [#allocation2], %s155
          %s157 = smul.u32 %s24, 4
          %s158 = sadd.s32 %s157, %s27
          %s159 = sadd.s32 %s158, %s26
          %161 = vsyncadd %s154, 0
          %s162 = scalar_lea.hbm %s0, %s159
          %s164 = sshll.u32 %s162, 4
          %s165 = int_to_ptr.hbm [resolvable:$true] %s164
          %s166 = sshll.u32 %s156, 4
          %s167 = int_to_ptr.vmem [resolvable:$true] %s166
          %169 = dma.hbm_to_vmem [thread:$0]  %s165, 16, %s167, %s154
        $region20: #{tpu_custom_call.1} parent=15 // pred_fallthru
          _
        // Predicated region
        $region21: #{tpu_custom_call.1} parent=15 // pred_check
          %p170 = pneg %p97
        $region22: #{tpu_custom_call.1} parent=15 // pred_check_branch
          %172 = sbr.rel (%p170) target = $region24
        $region23: #{tpu_custom_call.1} parent=15 // pred_region
          %s173 = sand.u32 %s87, 1
          %s174 = scalar_lea.sflag [#allocation6], %s173
          %s175 = sand.u32 %s87, 1
          %s176 = smul.addr %s175, 8
          %s177 = scalar_lea.vmem [#allocation5], %s176
          %179 = vsyncadd %s174, 0
          %s180 = smul.addr %s24, 2
          %s181 = sadd.s32 %s26, %s180
          %s182 = smul.addr %s181, 4
          %s183 = scalar_lea.hbm %s1, %s182
          %s184 = sshll.u32 %s183, 4
          %s185 = int_to_ptr.hbm [resolvable:$true] %s184
          %s186 = sshll.u32 %s177, 4
          %s187 = int_to_ptr.vmem [resolvable:$true] %s186
          %192 = dma.hbm_to_vmem [thread:$0]  %s185, 128, %s187, %s174, 64, 64, 4
        $region24: #{tpu_custom_call.1} parent=15 // pred_fallthru
          _
      $region16: #{tpu_custom_call.1} parent=5 // pred_fallthru
        _
      %p193 = scmp.le.s32.totalorder 1, %s17
      %p194 = scmp.lt.s32.totalorder %s17, 9
      %p195 = pnand %p193, %p194
      %p196 = pneg %p195
      // Predicated region
      $region25: #{tpu_custom_call.1} parent=5 // pred_check
        _
      $region26: #{tpu_custom_call.1} parent=5 // pred_check_branch
        %198 = sbr.rel (%p195) target = $region28
      $region27: #{tpu_custom_call.1} parent=5 // pred_region
        %s199 = ssub.s32 %s17, 1
        %s200 = sand.u32 %s62, 1
        %s201 = scalar_lea.sflag [#allocation3], %s200
        %s202 = sand.u32 %s62, 1
        %s203 = scalar_lea.vmem [#allocation2], %s202
        // Predicated region
        $region29: #{tpu_custom_call.1} parent=27 // pred_check
          %p204 = pneg %p75
        $region30: #{tpu_custom_call.1} parent=27 // pred_check_branch
          %206 = sbr.rel (%p204) target = $region32
        $region31: #{tpu_custom_call.1} parent=27 // pred_region
          %208 = dma.done %s201, 16
        $region32: #{tpu_custom_call.1} parent=27 // pred_fallthru
          _
        %s209 = sand.u32 %s90, 1
        %s210 = scalar_lea.sflag [#allocation6], %s209
        %s211 = sand.u32 %s90, 1
        %s212 = smul.addr %s211, 8
        %s213 = scalar_lea.vmem [#allocation5], %s212
        // Predicated region
        $region33: #{tpu_custom_call.1} parent=27 // pred_check
          %p214 = pneg %p103
        $region34: #{tpu_custom_call.1} parent=27 // pred_check_branch
          %216 = sbr.rel (%p214) target = $region36
        $region35: #{tpu_custom_call.1} parent=27 // pred_region
          %218 = dma.done %s210, 128
        $region36: #{tpu_custom_call.1} parent=27 // pred_fallthru
          _
        %s219 = sand.u32 %s62, 1
        %s220 = scalar_lea.sflag [#allocation3], %s219
        %s221 = sand.u32 %s62, 1
        %s222 = scalar_lea.vmem [#allocation2], %s221
        %p223 = pneg %p75
        %p224 = pneg %p72
        %s225 = sand.u32 %s90, 1
        %s226 = scalar_lea.sflag [#allocation6], %s225
        %s227 = sand.u32 %s90, 1
        %s228 = smul.addr %s227, 8
        %s229 = scalar_lea.vmem [#allocation5], %s228
        %p230 = pneg %p103
        %p231 = pneg %p100
        %p232 = pneg %p131
        %p233 = pneg %p128
        %s234 = sand.u32 %s118, 1
        %s235 = scalar_lea.sflag [#allocation4], %s234
        %s236 = sand.u32 %s118, 1
        %s237 = smul.addr %s236, 16
        %s238 = scalar_lea.vmem [#allocation7], %s237
        %s239 = smul.u32 %s28, 4
        %s240 = sadd.s32 %s239, %s31
        %s241 = sadd.s32 %s240, %s30
        %p242 = scmp.eq.s32.totalorder %s30, 0
        %p243 = scmp.eq.s32.totalorder %s31, 0
        %p244 = pnand %p242, %p243
        %p245 = pneg %p244
        // Predicated region
        $region37: #{tpu_custom_call.1} parent=27 // pred_check
          _
        $region38: #{tpu_custom_call.1} parent=27 // pred_check_branch
          %247 = sbr.rel (%p244) target = $region40
        $region39: #{tpu_custom_call.1} parent=27 // pred_region
          %248 = vst [vmem:[%s238] sm:$0xff] 0.0
          %249 = vst [vmem:[%s238 + $0x8] sm:$0xff] 0.0
        $region40: #{tpu_custom_call.1} parent=27 // pred_fallthru
          _
        %s250 = smul.u32 %s29, 128
        %v251 = vld [vmem:[%s203] sm:$0x1]
        %v252 = vstv %s250
        %v253 = vsub.s32 %v251, %v252
        %v254 = vlaneseq
        %v255 = vshrl.u32 %v254, 7
        %v256 = vadd.s32 %v255, 8
        %v257 = vadd.s32 %v255, 16
        %v258 = vadd.s32 %v255, 24
        %v259 = vadd.s32 %v255, 32
        %v260 = vadd.s32 %v255, 40
        %v261 = vadd.s32 %v255, 48
        %v262 = vadd.s32 %v255, 56
        %v263 = vadd.s32 %v255, 64
        %v264 = vadd.s32 %v255, 72
        %v265 = vadd.s32 %v255, 80
        %v266 = vadd.s32 %v255, 88
        %v267 = vadd.s32 %v255, 96
        %v268 = vadd.s32 %v255, 104
        %v269 = vadd.s32 %v255, 112
        %v270 = vadd.s32 %v255, 120
        %v271 = vperm.slane %v253, 0
        %vm272 = vcmp.eq.s32.totalorder %v255, %v271
        %vm273 = vcmp.eq.s32.totalorder %v256, %v271
        %vm274 = vcmp.eq.s32.totalorder %v257, %v271
        %vm275 = vcmp.eq.s32.totalorder %v258, %v271
        %vm276 = vcmp.eq.s32.totalorder %v259, %v271
        %vm277 = vcmp.eq.s32.totalorder %v260, %v271
        %vm278 = vcmp.eq.s32.totalorder %v261, %v271
        %vm279 = vcmp.eq.s32.totalorder %v262, %v271
        %vm280 = vcmp.eq.s32.totalorder %v263, %v271
        %vm281 = vcmp.eq.s32.totalorder %v264, %v271
        %vm282 = vcmp.eq.s32.totalorder %v265, %v271
        %vm283 = vcmp.eq.s32.totalorder %v266, %v271
        %vm284 = vcmp.eq.s32.totalorder %v267, %v271
        %vm285 = vcmp.eq.s32.totalorder %v268, %v271
        %vm286 = vcmp.eq.s32.totalorder %v269, %v271
        %vm287 = vcmp.eq.s32.totalorder %v270, %v271
        %v288 = vsel %vm272, 1.0, 0.0
        %v289 = vsel %vm273, 1.0, 0.0
        %v290 = vsel %vm274, 1.0, 0.0
        %v291 = vsel %vm275, 1.0, 0.0
        %v292 = vsel %vm276, 1.0, 0.0
        %v293 = vsel %vm277, 1.0, 0.0
        %v294 = vsel %vm278, 1.0, 0.0
        %v295 = vsel %vm279, 1.0, 0.0
        %v296 = vsel %vm280, 1.0, 0.0
        %v297 = vsel %vm281, 1.0, 0.0
        %v298 = vsel %vm282, 1.0, 0.0
        %v299 = vsel %vm283, 1.0, 0.0
        %v300 = vsel %vm284, 1.0, 0.0
        %v301 = vsel %vm285, 1.0, 0.0
        %v302 = vsel %vm286, 1.0, 0.0
        %v303 = vsel %vm287, 1.0, 0.0
        %v304 = vpack.c.bf16 %v289, %v288
        %v305 = vpack.c.bf16 %v291, %v290
        %v306 = vpack.c.bf16 %v293, %v292
        %v307 = vpack.c.bf16 %v295, %v294
        %v308 = vpack.c.bf16 %v297, %v296
        %v309 = vpack.c.bf16 %v299, %v298
        %v310 = vpack.c.bf16 %v301, %v300
        %v311 = vpack.c.bf16 %v303, %v302
        %v312 = vld [vmem:[%s213] sm:$0xf]
        %v313 = vld [vmem:[%s213 + $0x4] sm:$0xf]
        %v316 = vunpack.c.l.b16 %v312
        %v317 = vunpack.c.l.b16 %v313
        %v318 = vpack.c.b16 %v317, %v316
        %320 = vmatpush.bf16.xpose.msra.mxu0 %v311
        %321 = vmatpush.bf16.xpose.msra.mxu0 %v310
        %322 = vmatpush.bf16.xpose.msra.mxu0 %v309
        %323 = vmatpush.bf16.xpose.msra.mxu0 %v308
        %324 = vmatpush.bf16.xpose.msra.mxu0 %v307
        %325 = vmatpush.bf16.xpose.msra.mxu0 %v306
        %326 = vmatpush.bf16.xpose.msra.mxu0 %v305
        %327 = vmatpush.bf16.xpose.msra.mxu0 %v304
        %328 = vmatmul.bf16.gmra.mxu0 %v318
        %v329 = vpop.f32.mrf.mxu0
        %v330 = vadd.f32 0.0, %v329
        %v331 = vpop.f32.mrf.mxu0
        %v332 = vadd.f32 0.0, %v331
        %333 = vdwg.mxu0
        %v334 = vld [vmem:[%s238] sm:$0xff]
        %v335 = vld [vmem:[%s238 + $0x8] sm:$0xff]
        %v336 = vadd.f32 %v334, %v330
        %v337 = vadd.f32 %v335, %v332
        %338 = vst [vmem:[%s238] sm:$0xff] %v336
        %339 = vst [vmem:[%s238 + $0x8] sm:$0xff] %v337
        %s340 = sand.u32 %s118, 1
        %s341 = scalar_lea.sflag [#allocation4], %s340
        %s342 = sand.u32 %s118, 1
        %s343 = smul.addr %s342, 16
        %s344 = scalar_lea.vmem [#allocation7], %s343
        // Predicated region
        $region41: #{tpu_custom_call.1} parent=27 // pred_check
          %p345 = pneg %p128
        $region42: #{tpu_custom_call.1} parent=27 // pred_check_branch
          %347 = sbr.rel (%p345) target = $region44
        $region43: #{tpu_custom_call.1} parent=27 // pred_region
          %349 = vsyncadd %s341, 0
          %s350 = smul.addr %s28, 2
          %s351 = sadd.s32 %s29, %s350
          %s352 = smul.addr %s351, 8
          %s353 = scalar_lea.hbm %s2, %s352
          %s354 = sshll.u32 %s344, 4
          %s355 = int_to_ptr.vmem [resolvable:$true] %s354
          %s356 = sshll.u32 %s353, 4
          %s357 = int_to_ptr.hbm [resolvable:$true] %s356
          %362 = dma.vmem_to_hbm [thread:$0]  %s355, 256, %s357, %s341, 128, 128, 8
        $region44: #{tpu_custom_call.1} parent=27 // pred_fallthru
          _
      $region28: #{tpu_custom_call.1} parent=5 // pred_fallthru
        _
      %p363 = scmp.le.s32.totalorder 2, %s17
      // Predicated region
      $region45: #{tpu_custom_call.1} parent=5 // pred_check
        %p364 = pneg %p363
      $region46: #{tpu_custom_call.1} parent=5 // pred_check_branch
        %366 = sbr.rel (%p364) target = $region48
      $region47: #{tpu_custom_call.1} parent=5 // pred_region
        %s367 = ssub.s32 %s17, 2
        // Predicated region
        $region49: #{tpu_custom_call.1} parent=47 // pred_check
          %p368 = pneg %p134
        $region50: #{tpu_custom_call.1} parent=47 // pred_check_branch
          %370 = sbr.rel (%p368) target = $region52
        $region51: #{tpu_custom_call.1} parent=47 // pred_region
          %s371 = sand.u32 %s119, 1
          %s372 = scalar_lea.sflag [#allocation4], %s371
          %s373 = sand.u32 %s119, 1
          %s374 = smul.addr %s373, 16
          %s375 = scalar_lea.vmem [#allocation7], %s374
          %377 = dma.done %s372, 256
        $region52: #{tpu_custom_call.1} parent=47 // pred_fallthru
          _
      $region48: #{tpu_custom_call.1} parent=5 // pred_fallthru
        _
    $region6: #{tpu_custom_call.1} parent=1 // loop_footer
      %s21 = sadd.s32 1, %s17
    $region7: #{tpu_custom_call.1} parent=1 // loop_footer_branch
      %16 = sbr.rel target = $region3
    $region8: #{tpu_custom_call.1} parent=1 // loop_exit
      _
    %378 = vsyncpa [#allocation3], 1
    %s379 = scalar_lea.sflag [#allocation3], 1
    %380 = vsyncpa %s379, 1
    %381 = vsyncpa [#allocation6], 1
    %s382 = scalar_lea.sflag [#allocation6], 1
    %383 = vsyncpa %s382, 1
    %384 = vsyncpa [#allocation4], 1
    %s385 = scalar_lea.sflag [#allocation4], 1
    %386 = vsyncpa %s385, 1

</llo_original>
